<compile_context>
chip_gen: v6e
topology: v6e:2x2x1
jax: 0.10.0
libtpu: 0.0.40
codegen_flags: <defaults>
</compile_context>

<pallas_src>
import functools
import math

import jax
import jax.numpy as jnp
from jax.experimental import pallas as pl
from jax.experimental.pallas import tpu as pltpu

EMBEDDING_DIM = 100
NUM_CLASSES = 20
PAD = 1
INF = 1e13
KSIZE = 51
KPAD = 25
HID = EMBEDDING_DIM // 2
CLANE = 128   # lane width of the cosine-map matmul output (free within a granule)
CTAP = 32     # per-tap class block in the packed im2col (mult of 16 for bf16 sublanes)


# --------------------------------------------------------------------------
# One-shot GCN kernel (batch invariant, runs once):
#   new_lv = adj[-C:] @ ((relu(adj @ (inp @ W1) + b1)) @ W2) + b2
# All matmul operands are bf16, accumulation is f32.
# --------------------------------------------------------------------------
def gcn_kernel(inp_ref, adj_ref, adjl_ref, g1w_ref, g1b_ref, g2w_ref, g2b_ref,
               out_ref):
    f32 = jnp.float32
    bf16 = jnp.bfloat16
    sup1 = jnp.dot(inp_ref[...], g1w_ref[...], preferred_element_type=f32)
    h1 = jnp.maximum(
        jnp.dot(adj_ref[...], sup1.astype(bf16), preferred_element_type=f32)
        + g1b_ref[...], 0.0)
    sup2 = jnp.dot(h1.astype(bf16), g2w_ref[...], preferred_element_type=f32)
    out_ref[...] = (jnp.dot(adjl_ref[...], sup2.astype(bf16),
                            preferred_element_type=f32) + g2b_ref[...])


# --------------------------------------------------------------------------
# Per-batch-tile kernel: cosine map -> packed (class-on-sublanes) im2col conv
# -> class max -> lane-dense masked softmax -> MXU attention sum -> MLP.
# --------------------------------------------------------------------------
def leam_kernel(x_ref, maskf_ref, nlTn_ref, wrow_ref, cb_ref,
                f1w_ref, f1b_ref, f2w_ref, f2b_ref, z_ref, *,
                TB, S, C, K, KP, CT):
    f32 = jnp.float32
    bf16 = jnp.bfloat16

    x3 = x_ref[...]                                     # [TB, S, E] f32
    E = x3.shape[-1]
    xf = x3.reshape(TB * S, E)                          # fold batch onto sublanes

    # cosine-similarity map: label norms pre-folded into nlTn on the host.
    g = jnp.dot(xf.astype(bf16), nlTn_ref[...],
                preferred_element_type=f32)             # [TB*S, 128] (20 live lanes)
    nx2 = jnp.sum(xf * xf, axis=1, keepdims=True)       # [TB*S, 1]
    g = g * jnp.where(nx2 > 0.0, jax.lax.rsqrt(nx2), 0.0)

    # Conv1d(C, C, k=K, pad=KP) with classes on SUBLANES:
    # per sequence, transpose [S,128] -> [128,S], keep CT rows, build a compact
    # bf16 im2col [K*CT, S] (taps on sublanes, seq on lanes) and lane-concat
    # the TB sequences.  One matmul against the host-packed weight does the conv.
    zpad = jnp.zeros((CT, KP), bf16)
    cols = []
    for b in range(TB):
        g_b = g[b * S:(b + 1) * S, :]                   # [S, 128]  (aligned slice)
        gT_b = jnp.transpose(g_b, (1, 0))[:CT, :].astype(bf16)     # [CT, S]
        gTp = jnp.concatenate([zpad, gT_b, zpad], axis=1)          # [CT, S + 2*KP]
        cols.append(jnp.concatenate([gTp[:, k:k + S] for k in range(K)], axis=0))
    unfT = cols[0] if TB == 1 else jnp.concatenate(cols, axis=1)   # [K*CT, TB*S] bf16

    u = jnp.dot(wrow_ref[...], unfT, preferred_element_type=f32) + cb_ref[...]
    u = jnp.maximum(u, 0.0)                             # relu(conv)   [C, TB*S]
    m = jnp.max(u, axis=0, keepdims=True)               # max over classes [1, TB*S]

    # masked softmax over S, batched on a lane-dense [TB, S] layout.
    m2 = m.reshape(TB, S)
    maskf = maskf_ref[...].reshape(TB, S)
    mm = jnp.where(maskf > 0.5, m2, -INF)               # replace semantics (finite)
    mx = jnp.max(mm, axis=1, keepdims=True)
    e = jnp.exp(mm - mx)
    den = jnp.sum(e, axis=1, keepdims=True)
    bw = e * pl.reciprocal(den, approx=True)            # [TB, S]

    # attention-weighted sum on the MXU: z[b, :] = bw[b, :] @ x[b]   (per-b dots)
    x3b = x3.astype(bf16)
    z_rows = [jnp.dot(bw[b:b + 1, :].astype(bf16), x3b[b],
                      preferred_element_type=f32) for b in range(TB)]   # [1, E]
    z_all = z_rows[0] if TB == 1 else jnp.concatenate(z_rows, axis=0)   # [TB, E]

    # final MLP: Linear -> ReLU -> Linear (bf16 operands, f32 accumulation).
    h = jnp.maximum(jnp.dot(z_all.astype(bf16), f1w_ref[...],
                            preferred_element_type=f32) + f1b_ref[...], 0.0)
    out = jnp.dot(h.astype(bf16), f2w_ref[...],
                  preferred_element_type=f32) + f2b_ref[...]            # [TB, C]
    z_ref[...] = out.reshape(TB, 1, C)


# --------------------------------------------------------------------------
# Wrapper
# --------------------------------------------------------------------------
def _pick_tb(B, S):
    # >= 2 grid steps (both v7x TensorCores busy), aim for TB*S >= 256 rows
    # (fills the 256-wide MXU on v6e/v7x), cap the fold so the in-kernel
    # working set stays a few MB (safe against v5e's 16 MiB scoped VMEM).
    cands = [t for t in range(1, B + 1)
             if B % t == 0 and (B // t >= 2 or B == 1) and t * S <= 2048]
    if not cands:
        return 1
    reaching = [t for t in cands if t * S >= 256]
    return min(reaching) if reaching else max(cands)


def leam_forward(x_tokens, x_len, mask, emb_w, label_vectors, adj,
                 g1w, g1b, g2w, g2b, conv_w, conv_b, f1w, f1b, f2w, f2b):
    del x_len  # unused in the reference forward as well
    B, S = x_tokens.shape
    V, E = emb_w.shape
    C = label_vectors.shape[0]
    N = adj.shape[0]
    K = conv_w.shape[2]                    # conv_w is torch layout [Cout, Cin, K]
    H = f1w.shape[1]
    CT = CTAP
    assert S % 8 == 0, "sequence length must be a multiple of 8"
    assert C <= CT and C <= CLANE

    f32 = jnp.float32
    bf16 = jnp.bfloat16
    TB = _pick_tb(B, S)

    # ---------------- GCN hoisted out of the per-batch kernel (runs ONCE) ---
    inp = jnp.concatenate([emb_w[2:], label_vectors], axis=0)        # [N, E]
    adj_lab = adj[N - C:, :]                                         # [C, N]
    # TODO(synk): for a real-sized vocab the [N, N] adjacency does not fit
    # VMEM; this one-shot GCN call would then need a row-tiled grid with an
    # accumulator (or plain XLA) instead of full-array blocks.
    new_lv = pl.pallas_call(
        gcn_kernel,
        out_shape=jax.ShapeDtypeStruct((C, E), f32),
        grid=(1,),
        in_specs=[
            pl.BlockSpec((N, E), lambda i: (0, 0)),     # graph node features (bf16)
            pl.BlockSpec((N, N), lambda i: (0, 0)),     # adjacency (bf16)
            pl.BlockSpec((C, N), lambda i: (0, 0)),     # adj[-C:] rows (bf16)
            pl.BlockSpec((E, E), lambda i: (0, 0)),     # gc1 weight (bf16)
            pl.BlockSpec((1, E), lambda i: (0, 0)),     # gc1 bias (f32)
            pl.BlockSpec((E, E), lambda i: (0, 0)),     # gc2 weight (bf16)
            pl.BlockSpec((1, E), lambda i: (0, 0)),     # gc2 bias (f32)
        ],
        out_specs=pl.BlockSpec((C, E), lambda i: (0, 0)),
        compiler_params=pltpu.CompilerParams(
            dimension_semantics=("arbitrary",)),
    )(inp.astype(bf16), adj.astype(bf16), adj_lab.astype(bf16),
      g1w.astype(bf16), g1b.reshape(1, E).astype(f32),
      g2w.astype(bf16), g2b.reshape(1, E).astype(f32))               # [C, E]

    # label constants: fold 1/||new_lv|| into new_lv^T (one fewer kernel input
    # and one fewer broadcast multiply per grid step).
    nl2 = jnp.sum(new_lv * new_lv, axis=1, keepdims=True)            # [C, 1]
    nl_inv = jnp.where(nl2 > 0.0, jax.lax.rsqrt(nl2), 0.0)
    nlTn = jnp.zeros((E, CLANE), f32).at[:, :C].set((new_lv * nl_inv).T)
    nlTn = nlTn.astype(bf16)                                         # [E, 128]

    # conv weight packed for the class-on-sublanes im2col:
    #   wrow[o, k*CT + ci] = conv_w[o, ci, k]
    wtmp = jnp.transpose(conv_w, (0, 2, 1))                          # [Cout, K, Cin]
    wrow = jnp.zeros((C, K, CT), f32).at[:, :, :C].set(wtmp).reshape(C, K * CT)
    wrow = wrow.astype(bf16)                                         # [C, K*CT]
    cb_col = conv_b.reshape(C, 1).astype(f32)

    f1w_b = f1w.astype(bf16)
    f1b_r = f1b.reshape(1, H).astype(f32)
    f2w_b = f2w.astype(bf16)
    f2b_r = f2b.reshape(1, C).astype(f32)

    # embedding lookup (XLA glue); E stays un-padded -> ~28% less x DMA.
    x_emb = jnp.take(emb_w, x_tokens, axis=0)                        # [B, S, E] f32
    maskf = mask.astype(f32).reshape(B, 1, S)                        # float mask

    kernel = functools.partial(leam_kernel, TB=TB, S=S, C=C, K=K, KP=KPAD, CT=CT)

    z3 = pl.pallas_call(
        kernel,
        out_shape=jax.ShapeDtypeStruct((B, 1, C), f32),
        grid=(B // TB,),
        in_specs=[
            pl.BlockSpec((TB, S, E), lambda i: (i, 0, 0)),   # token embeddings
            pl.BlockSpec((TB, 1, S), lambda i: (i, 0, 0)),   # float mask (lane-dense)
            pl.BlockSpec((E, CLANE), lambda i: (0, 0)),      # normalized labels^T
            pl.BlockSpec((C, K * CT), lambda i: (0, 0)),     # packed conv weight
            pl.BlockSpec((C, 1), lambda i: (0, 0)),          # conv bias (column)
            pl.BlockSpec((E, H), lambda i: (0, 0)),          # fc1 weight
            pl.BlockSpec((1, H), lambda i: (0, 0)),          # fc1 bias
            pl.BlockSpec((H, C), lambda i: (0, 0)),          # fc2 weight
            pl.BlockSpec((1, C), lambda i: (0, 0)),          # fc2 bias
        ],
        out_specs=pl.BlockSpec((TB, 1, C), lambda i: (i, 0, 0)),
        compiler_params=pltpu.CompilerParams(
            dimension_semantics=("parallel",),
            # post-rewrite per-step working set is a few MB (bf16 im2col is
            # K*CT*TB*S*2 bytes), comfortably inside every generation's budget.
            vmem_limit_bytes=32 * 1024 * 1024),
    )(x_emb, maskf, nlTn, wrow, cb_col, f1w_b, f1b_r, f2w_b, f2b_r)

    return z3.reshape(B, C)                                          # [B, NUM_CLASSES]


if __name__ == "__main__":
    B, S, V = 4, 64, 34                      # small vocab / seq for the demo
    E, C = EMBEDDING_DIM, NUM_CLASSES
    N = (V - 2) + C

    key = jax.random.PRNGKey(0)
    keys = jax.random.split(key, 12)

    # embedding table (padding_idx row zeroed)
    emb_w = jax.random.normal(keys[0], (V, E), jnp.float32) * 0.1
    emb_w = emb_w.at[PAD].set(0.0)

    # label_vectors = tile(eye(C)/sqrt(E), E//C)
    label_vectors = jnp.tile(jnp.eye(C, dtype=jnp.float32) / math.sqrt(E), (1, E // C))

    # TODO(synk): `adj` is an undefined module-level global in the reference;
    # build a deterministic row-normalized adjacency over the N graph nodes.
    a = (jax.random.uniform(keys[1], (N, N)) < 0.15).astype(jnp.float32)
    a = jnp.clip(a + a.T + jnp.eye(N, dtype=jnp.float32), 0.0, 1.0)
    adj = a / jnp.sum(a, axis=1, keepdims=True)

    # GCN parameters (uniform +-1/sqrt(out_features), as in GraphConvolution)
    stdv = 1.0 / math.sqrt(E)
    g1w = jax.random.uniform(keys[2], (E, E), jnp.float32, -stdv, stdv)
    g1b = jax.random.uniform(keys[3], (E,), jnp.float32, -stdv, stdv)
    g2w = jax.random.uniform(keys[4], (E, E), jnp.float32, -stdv, stdv)
    g2b = jax.random.uniform(keys[5], (E,), jnp.float32, -stdv, stdv)

    # Conv1d(C, C, kernel=51, pad=25) parameters; torch layout (out, in, k)
    cstd = 1.0 / math.sqrt(C * KSIZE)
    conv_w = jax.random.uniform(keys[6], (C, C, KSIZE), jnp.float32, -cstd, cstd)
    conv_b = jax.random.uniform(keys[7], (C,), jnp.float32, -cstd, cstd)

    # final MLP: Linear(E, E//2) -> ReLU -> Linear(E//2, C)
    f1std = 1.0 / math.sqrt(E)
    f1w = jax.random.uniform(keys[8], (E, HID), jnp.float32, -f1std, f1std)
    f1b = jax.random.uniform(keys[9], (HID,), jnp.float32, -f1std, f1std)
    f2std = 1.0 / math.sqrt(HID)
    f2w = jax.random.uniform(keys[10], (HID, C), jnp.float32, -f2std, f2std)
    f2b = jax.random.uniform(keys[11], (C,), jnp.float32, -f2std, f2std)

    # tokens / lengths / mask (pad_first=True style: valid tokens at the end)
    x_len = jnp.array([12, 9, 64, 5], dtype=jnp.int32)
    pos = jnp.arange(S)[None, :]
    mask = (pos >= (S - x_len[:, None])).astype(jnp.int32)           # [B, S]
    tok = jax.random.randint(jax.random.PRNGKey(42), (B, S), 2, V)
    x_tokens = jnp.where(mask == 1, tok, PAD)

    z = leam_forward(x_tokens, x_len, mask, emb_w, label_vectors, adj,
                     g1w, g1b, g2w, g2b, conv_w, conv_b, f1w, f1b, f2w, f2b)
    z = jax.block_until_ready(z)
    assert z.shape == (B, C) and bool(jnp.all(jnp.isfinite(z)))
    print("KERNEL_OK")
</pallas_src>

<mosaic_0001>
module attributes {stable_mosaic.version = 11 : i64} {
  func.func @gcn_kernel(%arg0: i32, %arg1: memref<52x100xbf16, #tpu.memory_space<vmem>>, %arg2: memref<52x52xbf16, #tpu.memory_space<vmem>>, %arg3: memref<20x52xbf16, #tpu.memory_space<vmem>>, %arg4: memref<100x100xbf16, #tpu.memory_space<vmem>>, %arg5: memref<1x100xf32, #tpu.memory_space<vmem>>, %arg6: memref<100x100xbf16, #tpu.memory_space<vmem>>, %arg7: memref<1x100xf32, #tpu.memory_space<vmem>>, %arg8: memref<20x100xf32, #tpu.memory_space<vmem>>) attributes {dimension_semantics = [#tpu.dimension_semantics<arbitrary>], iteration_bounds = array<i64: 1>, scalar_prefetch = 0 : i64, scratch_operands = 0 : i64, tpu.core_type = #tpu.core_type<tc>, window_params = [{pipeline_mode = #tpu.pipeline_mode<synchronous>, transform_indices = @transform_0, window_bounds = array<i64: 52, 100>}, {pipeline_mode = #tpu.pipeline_mode<synchronous>, transform_indices = @transform_1, window_bounds = array<i64: 52, 52>}, {pipeline_mode = #tpu.pipeline_mode<synchronous>, transform_indices = @transform_2, window_bounds = array<i64: 20, 52>}, {pipeline_mode = #tpu.pipeline_mode<synchronous>, transform_indices = @transform_3, window_bounds = array<i64: 100, 100>}, {pipeline_mode = #tpu.pipeline_mode<synchronous>, transform_indices = @transform_4, window_bounds = array<i64: 1, 100>}, {pipeline_mode = #tpu.pipeline_mode<synchronous>, transform_indices = @transform_5, window_bounds = array<i64: 100, 100>}, {pipeline_mode = #tpu.pipeline_mode<synchronous>, transform_indices = @transform_6, window_bounds = array<i64: 1, 100>}, {pipeline_mode = #tpu.pipeline_mode<synchronous>, transform_indices = @transform_7, window_bounds = array<i64: 20, 100>}]} {
    %c0 = arith.constant 0 : index
    %c0_0 = arith.constant 0 : index
    %0 = vector.load %arg1[%c0, %c0_0] : memref<52x100xbf16, #tpu.memory_space<vmem>>, vector<52x100xbf16>
    %c0_1 = arith.constant 0 : index
    %c0_2 = arith.constant 0 : index
    %1 = vector.load %arg4[%c0_1, %c0_2] : memref<100x100xbf16, #tpu.memory_space<vmem>>, vector<100x100xbf16>
    %cst = arith.constant dense<0.000000e+00> : vector<52x100xf32>
    %2 = tpu.matmul %0, %1, %cst {dimension_numbers = #tpu.dot_dimension_numbers<[1], [0], [0], [1], [0, 0, 1, 1], [], []>} : vector<52x100xbf16>, vector<100x100xbf16>, vector<52x100xf32> -> vector<52x100xf32>
    %c0_3 = arith.constant 0 : index
    %c0_4 = arith.constant 0 : index
    %3 = vector.load %arg2[%c0_3, %c0_4] : memref<52x52xbf16, #tpu.memory_space<vmem>>, vector<52x52xbf16>
    %4 = arith.truncf %2 : vector<52x100xf32> to vector<52x100xbf16>
    %cst_5 = arith.constant dense<0.000000e+00> : vector<52x100xf32>
    %5 = tpu.matmul %3, %4, %cst_5 {dimension_numbers = #tpu.dot_dimension_numbers<[1], [0], [0], [1], [0, 0, 1, 1], [], []>} : vector<52x52xbf16>, vector<52x100xbf16>, vector<52x100xf32> -> vector<52x100xf32>
    %c0_6 = arith.constant 0 : index
    %c0_7 = arith.constant 0 : index
    %6 = vector.load %arg5[%c0_6, %c0_7] : memref<1x100xf32, #tpu.memory_space<vmem>>, vector<1x100xf32>
    %7 = vector.broadcast %6 : vector<1x100xf32> to vector<52x100xf32>
    %8 = arith.addf %5, %7 : vector<52x100xf32>
    %cst_8 = arith.constant 0.000000e+00 : f32
    %9 = vector.broadcast %cst_8 : f32 to vector<52x100xf32>
    %10 = arith.maximumf %8, %9 : vector<52x100xf32>
    %11 = arith.truncf %10 : vector<52x100xf32> to vector<52x100xbf16>
    %c0_9 = arith.constant 0 : index
    %c0_10 = arith.constant 0 : index
    %12 = vector.load %arg6[%c0_9, %c0_10] : memref<100x100xbf16, #tpu.memory_space<vmem>>, vector<100x100xbf16>
    %cst_11 = arith.constant dense<0.000000e+00> : vector<52x100xf32>
    %13 = tpu.matmul %11, %12, %cst_11 {dimension_numbers = #tpu.dot_dimension_numbers<[1], [0], [0], [1], [0, 0, 1, 1], [], []>} : vector<52x100xbf16>, vector<100x100xbf16>, vector<52x100xf32> -> vector<52x100xf32>
    %c0_12 = arith.constant 0 : index
    %c0_13 = arith.constant 0 : index
    %14 = vector.load %arg3[%c0_12, %c0_13] : memref<20x52xbf16, #tpu.memory_space<vmem>>, vector<20x52xbf16>
    %15 = arith.truncf %13 : vector<52x100xf32> to vector<52x100xbf16>
    %cst_14 = arith.constant dense<0.000000e+00> : vector<20x100xf32>
    %16 = tpu.matmul %14, %15, %cst_14 {dimension_numbers = #tpu.dot_dimension_numbers<[1], [0], [0], [1], [0, 0, 1, 1], [], []>} : vector<20x52xbf16>, vector<52x100xbf16>, vector<20x100xf32> -> vector<20x100xf32>
    %c0_15 = arith.constant 0 : index
    %c0_16 = arith.constant 0 : index
    %17 = vector.load %arg7[%c0_15, %c0_16] : memref<1x100xf32, #tpu.memory_space<vmem>>, vector<1x100xf32>
    %18 = vector.broadcast %17 : vector<1x100xf32> to vector<20x100xf32>
    %19 = arith.addf %16, %18 : vector<20x100xf32>
    %c0_17 = arith.constant 0 : index
    %c0_18 = arith.constant 0 : index
    %20 = vector.load %arg8[%c0_17, %c0_18] : memref<20x100xf32, #tpu.memory_space<vmem>>, vector<20x100xf32>
    tpu.vector_store %arg8[%c0_17, %c0_18], %19 {strides = array<i32>} : memref<20x100xf32, #tpu.memory_space<vmem>>, vector<20x100xf32>,
    return
  }
  func.func @transform_0(%arg0: i32) -> (i32, i32) {
    %c0_i32 = arith.constant 0 : i32
    %c0_i32_0 = arith.constant 0 : i32
    %c0_i32_1 = arith.constant 0 : i32
    return %c0_i32, %c0_i32_0 : i32, i32
  }
  func.func @transform_1(%arg0: i32) -> (i32, i32) {
    %c0_i32 = arith.constant 0 : i32
    %c0_i32_0 = arith.constant 0 : i32
    %c0_i32_1 = arith.constant 0 : i32
    return %c0_i32, %c0_i32_0 : i32, i32
  }
  func.func @transform_2(%arg0: i32) -> (i32, i32) {
    %c0_i32 = arith.constant 0 : i32
    %c0_i32_0 = arith.constant 0 : i32
    %c0_i32_1 = arith.constant 0 : i32
    return %c0_i32, %c0_i32_0 : i32, i32
  }
  func.func @transform_3(%arg0: i32) -> (i32, i32) {
    %c0_i32 = arith.constant 0 : i32
    %c0_i32_0 = arith.constant 0 : i32
    %c0_i32_1 = arith.constant 0 : i32
    return %c0_i32, %c0_i32_0 : i32, i32
  }
  func.func @transform_4(%arg0: i32) -> (i32, i32) {
    %c0_i32 = arith.constant 0 : i32
    %c0_i32_0 = arith.constant 0 : i32
    %c0_i32_1 = arith.constant 0 : i32
    return %c0_i32, %c0_i32_0 : i32, i32
  }
  func.func @transform_5(%arg0: i32) -> (i32, i32) {
    %c0_i32 = arith.constant 0 : i32
    %c0_i32_0 = arith.constant 0 : i32
    %c0_i32_1 = arith.constant 0 : i32
    return %c0_i32, %c0_i32_0 : i32, i32
  }
  func.func @transform_6(%arg0: i32) -> (i32, i32) {
    %c0_i32 = arith.constant 0 : i32
    %c0_i32_0 = arith.constant 0 : i32
    %c0_i32_1 = arith.constant 0 : i32
    return %c0_i32, %c0_i32_0 : i32, i32
  }
  func.func @transform_7(%arg0: i32) -> (i32, i32) {
    %c0_i32 = arith.constant 0 : i32
    %c0_i32_0 = arith.constant 0 : i32
    %c0_i32_1 = arith.constant 0 : i32
    return %c0_i32, %c0_i32_0 : i32, i32
  }
}

</mosaic_0001>

<llo_original>
// kernel: tpu_custom_call.1
$region0: #{tpu_custom_call.1}
  #allocation0 [shape = 'u32[]', space=smem, size = 0x4, offset = 0x4, fixed_abs, tag = 'smem constant byte address 0x4 - core index']
  #allocation1 [shape = 'u32[144,128]{1,0:T(1,128)}', space=vmem, size = 0x12000, scoped, tag = 'internal scratch']
  %s0 = inlined_call_operand.hbm [shape: bf16[52,100], index: 0, kind: input, shape index: {}]
  %s1 = inlined_call_operand.hbm [shape: bf16[52,52], index: 1, kind: input, shape index: {}]
  %s2 = inlined_call_operand.hbm [shape: bf16[20,52], index: 2, kind: input, shape index: {}]
  %s3 = inlined_call_operand.hbm [shape: bf16[100,100], index: 3, kind: input, shape index: {}]
  %s4 = inlined_call_operand.vmem [shape: f32[1,100], index: 4, kind: input, shape index: {}]
  %s5 = inlined_call_operand.hbm [shape: bf16[100,100], index: 5, kind: input, shape index: {}]
  %s6 = inlined_call_operand.vmem [shape: f32[1,100], index: 6, kind: input, shape index: {}]
  %s7 = inlined_call_operand.hbm [shape: f32[20,100], index: 7, kind: output, shape index: {}]
  %s8 = sld [smem:[#allocation0]]
  $region58: #{tpu_custom_call.1} parent=0
    _
  %s10 = ssub.s32 1, %s8
  %s11 = scalar_select 0, %s10, %s8
  $region1: #{tpu_custom_call.1} parent=0
    #allocation2 [shape = 'u8[14336]{0}', space=vmem, size = 0x3800, scoped, tag = 'input window, operand 0, single buffered']
    #allocation3 [shape = 's32[1]{0}', space=sflag, size = 0x4, scoped, tag = 'scoped memory for tpu_custom_call.1']
    #allocation4 [shape = 's32[1]{0}', space=sflag, size = 0x4, scoped, tag = 'scoped memory for tpu_custom_call.1']
    #allocation5 [shape = 'u8[14336]{0}', space=vmem, size = 0x3800, scoped, tag = 'input window, operand 1, single buffered']
    #allocation6 [shape = 's32[1]{0}', space=sflag, size = 0x4, scoped, tag = 'scoped memory for tpu_custom_call.1']
    #allocation7 [shape = 'u8[6144]{0}', space=vmem, size = 0x1800, scoped, tag = 'input window, operand 2, single buffered']
    #allocation8 [shape = 'u8[26624]{0}', space=vmem, size = 0x6800, scoped, tag = 'input window, operand 3, single buffered']
    #allocation9 [shape = 's32[1]{0}', space=sflag, size = 0x4, scoped, tag = 'scoped memory for tpu_custom_call.1']
    #allocation10 [shape = 'u8[26624]{0}', space=vmem, size = 0x6800, scoped, tag = 'input window, operand 5, single buffered']
    #allocation11 [shape = 'u8[12288]{0}', space=vmem, size = 0x3000, scoped, tag = 'output window, operand 0, single buffered']
    %12 = vsyncpa [#allocation3], 0
    %13 = vsyncpa [#allocation6], 0
    %14 = vsyncpa [#allocation9], 0
    %15 = vsyncpa [#allocation4], 0
    // Predicated region
    $region2: #{tpu_custom_call.1} parent=1 // pred_check
      _
    $region3: #{tpu_custom_call.1} parent=1 // pred_check_branch
      %17 = sbr.rel (0) target = $region5
    $region4: #{tpu_custom_call.1} parent=1 // pred_region
      %s19 = ssub.s32 448, 448
      %20 = vsyncadd [#allocation3], %s19
      %s21 = sshll.u32 [#allocation2], 4
      %s22 = int_to_ptr.vmem [resolvable:$true] %s21
      %27 = dma.hbm_to_vmem [thread:$0]  %s0, 448, %s22, [#allocation3], 64, 64, 4
    $region5: #{tpu_custom_call.1} parent=1 // pred_fallthru
      _
    // Predicated region
    $region6: #{tpu_custom_call.1} parent=1 // pred_check
      _
    $region7: #{tpu_custom_call.1} parent=1 // pred_check_branch
      %29 = sbr.rel (0) target = $region9
    $region8: #{tpu_custom_call.1} parent=1 // pred_region
      %s31 = ssub.s32 448, 448
      %32 = vsyncadd [#allocation6], %s31
      %s33 = sshll.u32 [#allocation5], 4
      %s34 = int_to_ptr.vmem [resolvable:$true] %s33
      %39 = dma.hbm_to_vmem [thread:$0]  %s1, 448, %s34, [#allocation6], 64, 64, 4
    $region9: #{tpu_custom_call.1} parent=1 // pred_fallthru
      _
    // Predicated region
    $region10: #{tpu_custom_call.1} parent=1 // pred_check
      _
    $region11: #{tpu_custom_call.1} parent=1 // pred_check_branch
      %41 = sbr.rel (0) target = $region13
    $region12: #{tpu_custom_call.1} parent=1 // pred_region
      %s43 = ssub.s32 192, 192
      %44 = vsyncadd [#allocation6], %s43
      %s45 = sshll.u32 [#allocation7], 4
      %s46 = int_to_ptr.vmem [resolvable:$true] %s45
      %51 = dma.hbm_to_vmem [thread:$0]  %s2, 192, %s46, [#allocation6], 64, 64, 4
    $region13: #{tpu_custom_call.1} parent=1 // pred_fallthru
      _
    // Predicated region
    $region14: #{tpu_custom_call.1} parent=1 // pred_check
      _
    $region15: #{tpu_custom_call.1} parent=1 // pred_check_branch
      %53 = sbr.rel (0) target = $region17
    $region16: #{tpu_custom_call.1} parent=1 // pred_region
      %s55 = ssub.s32 832, 832
      %56 = vsyncadd [#allocation9], %s55
      %s57 = sshll.u32 [#allocation8], 4
      %s58 = int_to_ptr.vmem [resolvable:$true] %s57
      %63 = dma.hbm_to_vmem [thread:$0]  %s3, 832, %s58, [#allocation9], 64, 64, 4
    $region17: #{tpu_custom_call.1} parent=1 // pred_fallthru
      _
    // Predicated region
    $region18: #{tpu_custom_call.1} parent=1 // pred_check
      _
    $region19: #{tpu_custom_call.1} parent=1 // pred_check_branch
      %65 = sbr.rel (0) target = $region21
    $region20: #{tpu_custom_call.1} parent=1 // pred_region
      _
    $region21: #{tpu_custom_call.1} parent=1 // pred_fallthru
      _
    // Predicated region
    $region22: #{tpu_custom_call.1} parent=1 // pred_check
      _
    $region23: #{tpu_custom_call.1} parent=1 // pred_check_branch
      %67 = sbr.rel (0) target = $region25
    $region24: #{tpu_custom_call.1} parent=1 // pred_region
      %s69 = ssub.s32 832, 832
      %70 = vsyncadd [#allocation9], %s69
      %s71 = sshll.u32 [#allocation10], 4
      %s72 = int_to_ptr.vmem [resolvable:$true] %s71
      %77 = dma.hbm_to_vmem [thread:$0]  %s5, 832, %s72, [#allocation9], 64, 64, 4
    $region25: #{tpu_custom_call.1} parent=1 // pred_fallthru
      _
    // Predicated region
    $region26: #{tpu_custom_call.1} parent=1 // pred_check
      _
    $region27: #{tpu_custom_call.1} parent=1 // pred_check_branch
      %79 = sbr.rel (0) target = $region29
    $region28: #{tpu_custom_call.1} parent=1 // pred_region
      _
    $region29: #{tpu_custom_call.1} parent=1 // pred_fallthru
      _
    // Predicated region
    $region30: #{tpu_custom_call.1} parent=1 // pred_check
      _
    $region31: #{tpu_custom_call.1} parent=1 // pred_check_branch
      %81 = sbr.rel (0) target = $region33
    $region32: #{tpu_custom_call.1} parent=1 // pred_region
      %82 = dma.done [#allocation3], 448
    $region33: #{tpu_custom_call.1} parent=1 // pred_fallthru
      _
    // Predicated region
    $region34: #{tpu_custom_call.1} parent=1 // pred_check
      _
    $region35: #{tpu_custom_call.1} parent=1 // pred_check_branch
      %84 = sbr.rel (0) target = $region37
    $region36: #{tpu_custom_call.1} parent=1 // pred_region
      %85 = dma.done [#allocation6], 448
    $region37: #{tpu_custom_call.1} parent=1 // pred_fallthru
      _
    // Predicated region
    $region38: #{tpu_custom_call.1} parent=1 // pred_check
      _
    $region39: #{tpu_custom_call.1} parent=1 // pred_check_branch
      %87 = sbr.rel (0) target = $region41
    $region40: #{tpu_custom_call.1} parent=1 // pred_region
      %88 = dma.done [#allocation6], 192
    $region41: #{tpu_custom_call.1} parent=1 // pred_fallthru
      _
    // Predicated region
    $region42: #{tpu_custom_call.1} parent=1 // pred_check
      _
    $region43: #{tpu_custom_call.1} parent=1 // pred_check_branch
      %90 = sbr.rel (0) target = $region45
    $region44: #{tpu_custom_call.1} parent=1 // pred_region
      %91 = dma.done [#allocation9], 832
    $region45: #{tpu_custom_call.1} parent=1 // pred_fallthru
      _
    // Predicated region
    $region46: #{tpu_custom_call.1} parent=1 // pred_check
      _
    $region47: #{tpu_custom_call.1} parent=1 // pred_check_branch
      %93 = sbr.rel (0) target = $region49
    $region48: #{tpu_custom_call.1} parent=1 // pred_region
      %94 = dma.done [#allocation9], 832
    $region49: #{tpu_custom_call.1} parent=1 // pred_fallthru
      _
    %v96 = vld [vmem:[#allocation2] sm:$0xf]
    %v97 = vld [vmem:[#allocation2 + $0x4] sm:$0xf]
    %v98 = vld [vmem:[#allocation2 + $0x8] sm:$0xf]
    %v99 = vld [vmem:[#allocation2 + $0xc] sm:$0xf]
    %v100 = vld [vmem:[#allocation2 + $0x10] sm:$0xf]
    %v101 = vld [vmem:[#allocation2 + $0x14] sm:$0xf]
    %v102 = vld [vmem:[#allocation2 + $0x18] sm:$0x3]
    %v103 = vld [vmem:[#allocation8] sm:$0xf]
    %v104 = vld [vmem:[#allocation8 + $0x4] sm:$0xf]
    %v105 = vld [vmem:[#allocation8 + $0x8] sm:$0xf]
    %v106 = vld [vmem:[#allocation8 + $0xc] sm:$0xf]
    %v107 = vld [vmem:[#allocation8 + $0x10] sm:$0xf]
    %v108 = vld [vmem:[#allocation8 + $0x14] sm:$0xf]
    %v109 = vld [vmem:[#allocation8 + $0x18] sm:$0xf]
    %v110 = vld [vmem:[#allocation8 + $0x1c] sm:$0xf]
    %v111 = vld [vmem:[#allocation8 + $0x20] sm:$0xf]
    %v112 = vld [vmem:[#allocation8 + $0x24] sm:$0xf]
    %v113 = vld [vmem:[#allocation8 + $0x28] sm:$0xf]
    %v114 = vld [vmem:[#allocation8 + $0x2c] sm:$0xf]
    %v115 = vld [vmem:[#allocation8 + $0x30] sm:$0x3]
    %v123 = vunpack.c.l.b16 %v96
    %v124 = vunpack.c.l.b16 %v97
    %v125 = vunpack.c.l.b16 %v98
    %v126 = vunpack.c.l.b16 %v99
    %v127 = vunpack.c.l.b16 %v100
    %v128 = vunpack.c.l.b16 %v101
    %v129 = vunpack.c.l.b16 %v102
    %v130 = vpack.c.b16 %v124, %v123
    %v131 = vpack.c.b16 %v126, %v125
    %v132 = vpack.c.b16 %v128, %v127
    %v133 = vpack.c.b16 %v129, %v129
    %v147 = vunpack.c.l.b16 %v103
    %v148 = vunpack.c.l.b16 %v104
    %v149 = vunpack.c.l.b16 %v105
    %v150 = vunpack.c.l.b16 %v106
    %v151 = vunpack.c.l.b16 %v107
    %v152 = vunpack.c.l.b16 %v108
    %v153 = vunpack.c.l.b16 %v109
    %v154 = vunpack.c.l.b16 %v110
    %v155 = vunpack.c.l.b16 %v111
    %v156 = vunpack.c.l.b16 %v112
    %v157 = vunpack.c.l.b16 %v113
    %v158 = vunpack.c.l.b16 %v114
    %v159 = vunpack.c.l.b16 %v115
    %v160 = vpack.c.b16 %v148, %v147
    %v161 = vpack.c.b16 %v150, %v149
    %v162 = vpack.c.b16 %v152, %v151
    %v163 = vpack.c.b16 %v154, %v153
    %v164 = vpack.c.b16 %v156, %v155
    %v165 = vpack.c.b16 %v158, %v157
    %v166 = vpack.c.b16 %v159, %v159
    %vm173 = vcmask 818176
    %v175 = vsel %vm173, %v130, 0
    %v178 = vsel %vm173, %v131, 0
    %v181 = vsel %vm173, %v132, 0
    %v184 = vsel %vm173, %v133, 0
    %vm186 = vcmask 1041408
    %v188 = vsel %vm186, %v166, 0
    %190 = vmatprep.subr.bf16.mxu0 0
    %191 = vmatpush1.bf16.msra.mxu0 0
    %192 = vmatprep.subr.bf16.mxu0 0
    %193 = vmatpush1.bf16.msra.mxu0 %v188
    %194 = vmatprep.subr.bf16.mxu0 0
    %195 = vmatpush1.bf16.msra.mxu0 %v165
    %196 = vmatprep.subr.bf16.mxu0 0
    %197 = vmatpush1.bf16.msra.mxu0 %v164
    %198 = vmatprep.subr.bf16.mxu0 0
    %199 = vmatpush1.bf16.msra.mxu0 %v163
    %200 = vmatprep.subr.bf16.mxu0 0
    %201 = vmatpush1.bf16.msra.mxu0 %v162
    %202 = vmatprep.subr.bf16.mxu0 0
    %203 = vmatpush1.bf16.msra.mxu0 %v161
    %204 = vmatprep.subr.bf16.mxu0 0
    %205 = vmatpush1.bf16.msra.mxu0 %v160
    %206 = vmatprep.subr.bf16.mxu0 0
    %207 = vmatpush2.bf16.msra.mxu0 0
    %208 = vmatprep.subr.bf16.mxu0 0
    %209 = vmatpush2.bf16.msra.mxu0 0
    %210 = vmatprep.subr.bf16.mxu0 0
    %211 = vmatpush2.bf16.msra.mxu0 0
    %212 = vmatprep.subr.bf16.mxu0 0
    %213 = vmatpush2.bf16.msra.mxu0 0
    %214 = vmatprep.subr.bf16.mxu0 0
    %215 = vmatpush2.bf16.msra.mxu0 0
    %216 = vmatprep.subr.bf16.mxu0 0
    %217 = vmatpush2.bf16.msra.mxu0 0
    %218 = vmatprep.subr.bf16.mxu0 0
    %219 = vmatpush2.bf16.msra.mxu0 0
    %220 = vmatprep.subr.bf16.mxu0 0
    %221 = vmatpush2.bf16.msra.mxu0 0
    %222 = vmatprep.mubr.bf16.mxu0 0
    %223 = vmatmul.mubr.bf16.gmra.mxu0 %v175
    %v224 = vpop.f32.mrf.mxu0
    %v225 = vadd.f32 0.0, %v224
    %v226 = vpop.f32.mrf.mxu0
    %v227 = vpop.f32.mrf.mxu0
    %v228 = vadd.f32 0.0, %v227
    %v229 = vpop.f32.mrf.mxu0
    %230 = vmatprep.mubr.bf16.mxu0 0
    %231 = vmatmul.mubr.bf16.gmra.mxu0 %v178
    %v232 = vpop.f32.mrf.mxu0
    %v233 = vadd.f32 0.0, %v232
    %v234 = vpop.f32.mrf.mxu0
    %v235 = vpop.f32.mrf.mxu0
    %v236 = vadd.f32 0.0, %v235
    %v237 = vpop.f32.mrf.mxu0
    %238 = vmatprep.mubr.bf16.mxu0 0
    %239 = vmatmul.mubr.bf16.gmra.mxu0 %v181
    %v240 = vpop.f32.mrf.mxu0
    %v241 = vadd.f32 0.0, %v240
    %v242 = vpop.f32.mrf.mxu0
    %v243 = vpop.f32.mrf.mxu0
    %v244 = vadd.f32 0.0, %v243
    %v245 = vpop.f32.mrf.mxu0
    %246 = vmatprep.mubr.bf16.mxu0 0
    %247 = vmatmul.mubr.bf16.gmra.mxu0 %v184
    %v248 = vpop.f32.mrf.mxu0
    %v249 = vadd.f32 0.0, %v248
    %v250 = vpop.f32.mrf.mxu0
    %v251 = vpop.f32.mrf.mxu0
    %v252 = vpop.f32.mrf.mxu0
    %253 = vdwg.mxu0
    %v254 = vld [vmem:[#allocation5] sm:$0xf]
    %v255 = vld [vmem:[#allocation5 + $0x4] sm:$0xf]
    %v256 = vld [vmem:[#allocation5 + $0x8] sm:$0xf]
    %v257 = vld [vmem:[#allocation5 + $0xc] sm:$0xf]
    %v258 = vld [vmem:[#allocation5 + $0x10] sm:$0xf]
    %v259 = vld [vmem:[#allocation5 + $0x14] sm:$0xf]
    %v260 = vld [vmem:[#allocation5 + $0x18] sm:$0x3]
    %v261 = vpack.c.bf16 %v228, %v225
    %v262 = vpack.c.bf16 %v236, %v233
    %v263 = vpack.c.bf16 %v244, %v241
    %v264 = vpack.c.bf16 %v249, %v249
    %v265 = vld [vmem:[%s4] sm:$0x1]
    %v267 = vlaneseq
    %v268 = vshrl.u32 %v267, 7
    %v269 = vsub.s32 0, %v268
    %v270 = vrot.slane %v265, %v269
    %v279 = vunpack.c.l.b16 %v254
    %v280 = vunpack.c.l.b16 %v255
    %v281 = vunpack.c.l.b16 %v256
    %v282 = vunpack.c.l.b16 %v257
    %v283 = vunpack.c.l.b16 %v258
    %v284 = vunpack.c.l.b16 %v259
    %v285 = vunpack.c.l.b16 %v260
    %v286 = vpack.c.b16 %v280, %v279
    %v287 = vpack.c.b16 %v282, %v281
    %v288 = vpack.c.b16 %v284, %v283
    %v289 = vpack.c.b16 %v285, %v285
    %vm290 = vcmask 424960
    %v292 = vsel %vm290, %v286, 0
    %v295 = vsel %vm290, %v287, 0
    %v298 = vsel %vm290, %v288, 0
    %v301 = vsel %vm290, %v289, 0
    %v304 = vsel %vm186, %v264, 0
    %306 = vmatprep.subr.bf16.mxu0 0
    %307 = vmatpush1.bf16.msra.mxu0 0
    %308 = vmatprep.subr.bf16.mxu0 0
    %309 = vmatpush1.bf16.msra.mxu0 0
    %310 = vmatprep.subr.bf16.mxu0 0
    %311 = vmatpush1.bf16.msra.mxu0 0
    %312 = vmatprep.subr.bf16.mxu0 0
    %313 = vmatpush1.bf16.msra.mxu0 0
    %314 = vmatprep.subr.bf16.mxu0 0
    %315 = vmatpush1.bf16.msra.mxu0 %v304
    %316 = vmatprep.subr.bf16.mxu0 0
    %317 = vmatpush1.bf16.msra.mxu0 %v263
    %318 = vmatprep.subr.bf16.mxu0 0
    %319 = vmatpush1.bf16.msra.mxu0 %v262
    %320 = vmatprep.subr.bf16.mxu0 0
    %321 = vmatpush1.bf16.msra.mxu0 %v261
    %322 = vmatprep.subr.bf16.mxu0 0
    %323 = vmatpush2.bf16.msra.mxu0 0
    %324 = vmatprep.subr.bf16.mxu0 0
    %325 = vmatpush2.bf16.msra.mxu0 0
    %326 = vmatprep.subr.bf16.mxu0 0
    %327 = vmatpush2.bf16.msra.mxu0 0
    %328 = vmatprep.subr.bf16.mxu0 0
    %329 = vmatpush2.bf16.msra.mxu0 0
    %330 = vmatprep.subr.bf16.mxu0 0
    %331 = vmatpush2.bf16.msra.mxu0 0
    %332 = vmatprep.subr.bf16.mxu0 0
    %333 = vmatpush2.bf16.msra.mxu0 0
    %334 = vmatprep.subr.bf16.mxu0 0
    %335 = vmatpush2.bf16.msra.mxu0 0
    %336 = vmatprep.subr.bf16.mxu0 0
    %337 = vmatpush2.bf16.msra.mxu0 0
    %338 = vmatprep.mubr.bf16.mxu0 0
    %339 = vmatmul.mubr.bf16.gmra.mxu0 %v292
    %v340 = vpop.f32.mrf.mxu0
    %v341 = vadd.f32 %v270, %v340
    %v342 = vpop.f32.mrf.mxu0
    %v343 = vpop.f32.mrf.mxu0
    %v344 = vadd.f32 %v270, %v343
    %v345 = vpop.f32.mrf.mxu0
    %346 = vmatprep.mubr.bf16.mxu0 0
    %347 = vmatmul.mubr.bf16.gmra.mxu0 %v295
    %v348 = vpop.f32.mrf.mxu0
    %v349 = vadd.f32 %v270, %v348
    %v350 = vpop.f32.mrf.mxu0
    %v351 = vpop.f32.mrf.mxu0
    %v352 = vadd.f32 %v270, %v351
    %v353 = vpop.f32.mrf.mxu0
    %354 = vmatprep.mubr.bf16.mxu0 0
    %355 = vmatmul.mubr.bf16.gmra.mxu0 %v298
    %v356 = vpop.f32.mrf.mxu0
    %v357 = vadd.f32 %v270, %v356
    %v358 = vpop.f32.mrf.mxu0
    %v359 = vpop.f32.mrf.mxu0
    %v360 = vadd.f32 %v270, %v359
    %v361 = vpop.f32.mrf.mxu0
    %362 = vmatprep.mubr.bf16.mxu0 0
    %363 = vmatmul.mubr.bf16.gmra.mxu0 %v301
    %v364 = vpop.f32.mrf.mxu0
    %v365 = vadd.f32 %v270, %v364
    %v366 = vpop.f32.mrf.mxu0
    %v367 = vpop.f32.mrf.mxu0
    %v368 = vpop.f32.mrf.mxu0
    %369 = vdwg.mxu0
    %v370 = vmax.f32 %v341, 0.0
    %v371 = vmax.f32 %v344, 0.0
    %v372 = vmax.f32 %v349, 0.0
    %v373 = vmax.f32 %v352, 0.0
    %v374 = vmax.f32 %v357, 0.0
    %v375 = vmax.f32 %v360, 0.0
    %v376 = vmax.f32 %v365, 0.0
    %v377 = vpack.c.bf16 %v371, %v370
    %v378 = vpack.c.bf16 %v373, %v372
    %v379 = vpack.c.bf16 %v375, %v374
    %v380 = vpack.c.bf16 %v376, %v376
    %v381 = vld [vmem:[#allocation10] sm:$0xf]
    %v382 = vld [vmem:[#allocation10 + $0x4] sm:$0xf]
    %v383 = vld [vmem:[#allocation10 + $0x8] sm:$0xf]
    %v384 = vld [vmem:[#allocation10 + $0xc] sm:$0xf]
    %v385 = vld [vmem:[#allocation10 + $0x10] sm:$0xf]
    %v386 = vld [vmem:[#allocation10 + $0x14] sm:$0xf]
    %v387 = vld [vmem:[#allocation10 + $0x18] sm:$0xf]
    %v388 = vld [vmem:[#allocation10 + $0x1c] sm:$0xf]
    %v389 = vld [vmem:[#allocation10 + $0x20] sm:$0xf]
    %v390 = vld [vmem:[#allocation10 + $0x24] sm:$0xf]
    %v391 = vld [vmem:[#allocation10 + $0x28] sm:$0xf]
    %v392 = vld [vmem:[#allocation10 + $0x2c] sm:$0xf]
    %v393 = vld [vmem:[#allocation10 + $0x30] sm:$0x3]
    %v407 = vunpack.c.l.b16 %v381
    %v408 = vunpack.c.l.b16 %v382
    %v409 = vunpack.c.l.b16 %v383
    %v410 = vunpack.c.l.b16 %v384
    %v411 = vunpack.c.l.b16 %v385
    %v412 = vunpack.c.l.b16 %v386
    %v413 = vunpack.c.l.b16 %v387
    %v414 = vunpack.c.l.b16 %v388
    %v415 = vunpack.c.l.b16 %v389
    %v416 = vunpack.c.l.b16 %v390
    %v417 = vunpack.c.l.b16 %v391
    %v418 = vunpack.c.l.b16 %v392
    %v419 = vunpack.c.l.b16 %v393
    %v420 = vpack.c.b16 %v408, %v407
    %v421 = vpack.c.b16 %v410, %v409
    %v422 = vpack.c.b16 %v412, %v411
    %v423 = vpack.c.b16 %v414, %v413
    %v424 = vpack.c.b16 %v416, %v415
    %v425 = vpack.c.b16 %v418, %v417
    %v426 = vpack.c.b16 %v419, %v419
    %v434 = vsel %vm173, %v377, 0
    %v437 = vsel %vm173, %v378, 0
    %v440 = vsel %vm173, %v379, 0
    %v443 = vsel %vm173, %v380, 0
    %v446 = vsel %vm186, %v426, 0
    %448 = vmatprep.subr.bf16.mxu0 0
    %449 = vmatpush1.bf16.msra.mxu0 0
    %450 = vmatprep.subr.bf16.mxu0 0
    %451 = vmatpush1.bf16.msra.mxu0 %v446
    %452 = vmatprep.subr.bf16.mxu0 0
    %453 = vmatpush1.bf16.msra.mxu0 %v425
    %454 = vmatprep.subr.bf16.mxu0 0
    %455 = vmatpush1.bf16.msra.mxu0 %v424
    %456 = vmatprep.subr.bf16.mxu0 0
    %457 = vmatpush1.bf16.msra.mxu0 %v423
    %458 = vmatprep.subr.bf16.mxu0 0
    %459 = vmatpush1.bf16.msra.mxu0 %v422
    %460 = vmatprep.subr.bf16.mxu0 0
    %461 = vmatpush1.bf16.msra.mxu0 %v421
    %462 = vmatprep.subr.bf16.mxu0 0
    %463 = vmatpush1.bf16.msra.mxu0 %v420
    %464 = vmatprep.subr.bf16.mxu0 0
    %465 = vmatpush2.bf16.msra.mxu0 0
    %466 = vmatprep.subr.bf16.mxu0 0
    %467 = vmatpush2.bf16.msra.mxu0 0
    %468 = vmatprep.subr.bf16.mxu0 0
    %469 = vmatpush2.bf16.msra.mxu0 0
    %470 = vmatprep.subr.bf16.mxu0 0
    %471 = vmatpush2.bf16.msra.mxu0 0
    %472 = vmatprep.subr.bf16.mxu0 0
    %473 = vmatpush2.bf16.msra.mxu0 0
    %474 = vmatprep.subr.bf16.mxu0 0
    %475 = vmatpush2.bf16.msra.mxu0 0
    %476 = vmatprep.subr.bf16.mxu0 0
    %477 = vmatpush2.bf16.msra.mxu0 0
    %478 = vmatprep.subr.bf16.mxu0 0
    %479 = vmatpush2.bf16.msra.mxu0 0
    %480 = vmatprep.mubr.bf16.mxu0 0
    %481 = vmatmul.mubr.bf16.gmra.mxu0 %v434
    %v482 = vpop.f32.mrf.mxu0
    %v483 = vadd.f32 0.0, %v482
    %v484 = vpop.f32.mrf.mxu0
    %v485 = vpop.f32.mrf.mxu0
    %v486 = vadd.f32 0.0, %v485
    %v487 = vpop.f32.mrf.mxu0
    %488 = vmatprep.mubr.bf16.mxu0 0
    %489 = vmatmul.mubr.bf16.gmra.mxu0 %v437
    %v490 = vpop.f32.mrf.mxu0
    %v491 = vadd.f32 0.0, %v490
    %v492 = vpop.f32.mrf.mxu0
    %v493 = vpop.f32.mrf.mxu0
    %v494 = vadd.f32 0.0, %v493
    %v495 = vpop.f32.mrf.mxu0
    %496 = vmatprep.mubr.bf16.mxu0 0
    %497 = vmatmul.mubr.bf16.gmra.mxu0 %v440
    %v498 = vpop.f32.mrf.mxu0
    %v499 = vadd.f32 0.0, %v498
    %v500 = vpop.f32.mrf.mxu0
    %v501 = vpop.f32.mrf.mxu0
    %v502 = vadd.f32 0.0, %v501
    %v503 = vpop.f32.mrf.mxu0
    %504 = vmatprep.mubr.bf16.mxu0 0
    %505 = vmatmul.mubr.bf16.gmra.mxu0 %v443
    %v506 = vpop.f32.mrf.mxu0
    %v507 = vadd.f32 0.0, %v506
    %v508 = vpop.f32.mrf.mxu0
    %v509 = vpop.f32.mrf.mxu0
    %v510 = vpop.f32.mrf.mxu0
    %511 = vdwg.mxu0
    %v512 = vld [vmem:[#allocation7] sm:$0xf]
    %v513 = vld [vmem:[#allocation7 + $0x4] sm:$0xf]
    %v514 = vld [vmem:[#allocation7 + $0x8] sm:$0x3]
    %v515 = vpack.c.bf16 %v486, %v483
    %v516 = vpack.c.bf16 %v494, %v491
    %v517 = vpack.c.bf16 %v502, %v499
    %v518 = vpack.c.bf16 %v507, %v507
    %v519 = vld [vmem:[%s6] sm:$0x1]
    %v521 = vlaneseq
    %v522 = vshrl.u32 %v521, 7
    %v523 = vsub.s32 0, %v522
    %v524 = vrot.slane %v519, %v523
    %v529 = vunpack.c.l.b16 %v512
    %v530 = vunpack.c.l.b16 %v513
    %v531 = vunpack.c.l.b16 %v514
    %v532 = vpack.c.b16 %v530, %v529
    %v533 = vpack.c.b16 %v531, %v531
    %v535 = vsel %vm290, %v532, 0
    %v538 = vsel %vm290, %v533, 0
    %v541 = vsel %vm186, %v518, 0
    %543 = vmatprep.subr.bf16.mxu0 0
    %544 = vmatpush1.bf16.msra.mxu0 0
    %545 = vmatprep.subr.bf16.mxu0 0
    %546 = vmatpush1.bf16.msra.mxu0 0
    %547 = vmatprep.subr.bf16.mxu0 0
    %548 = vmatpush1.bf16.msra.mxu0 0
    %549 = vmatprep.subr.bf16.mxu0 0
    %550 = vmatpush1.bf16.msra.mxu0 0
    %551 = vmatprep.subr.bf16.mxu0 0
    %552 = vmatpush1.bf16.msra.mxu0 %v541
    %553 = vmatprep.subr.bf16.mxu0 0
    %554 = vmatpush1.bf16.msra.mxu0 %v517
    %555 = vmatprep.subr.bf16.mxu0 0
    %556 = vmatpush1.bf16.msra.mxu0 %v516
    %557 = vmatprep.subr.bf16.mxu0 0
    %558 = vmatpush1.bf16.msra.mxu0 %v515
    %559 = vmatprep.subr.bf16.mxu0 0
    %560 = vmatpush2.bf16.msra.mxu0 0
    %561 = vmatprep.subr.bf16.mxu0 0
    %562 = vmatpush2.bf16.msra.mxu0 0
    %563 = vmatprep.subr.bf16.mxu0 0
    %564 = vmatpush2.bf16.msra.mxu0 0
    %565 = vmatprep.subr.bf16.mxu0 0
    %566 = vmatpush2.bf16.msra.mxu0 0
    %567 = vmatprep.subr.bf16.mxu0 0
    %568 = vmatpush2.bf16.msra.mxu0 0
    %569 = vmatprep.subr.bf16.mxu0 0
    %570 = vmatpush2.bf16.msra.mxu0 0
    %571 = vmatprep.subr.bf16.mxu0 0
    %572 = vmatpush2.bf16.msra.mxu0 0
    %573 = vmatprep.subr.bf16.mxu0 0
    %574 = vmatpush2.bf16.msra.mxu0 0
    %575 = vmatprep.mubr.bf16.mxu0 0
    %576 = vmatmul.mubr.bf16.gmra.mxu0 %v535
    %v577 = vpop.f32.mrf.mxu0
    %v578 = vadd.f32 %v524, %v577
    %v579 = vpop.f32.mrf.mxu0
    %v580 = vpop.f32.mrf.mxu0
    %v581 = vadd.f32 %v524, %v580
    %v582 = vpop.f32.mrf.mxu0
    %583 = vmatprep.mubr.bf16.mxu0 0
    %584 = vmatmul.mubr.bf16.gmra.mxu0 %v538
    %v585 = vpop.f32.mrf.mxu0
    %v586 = vadd.f32 %v524, %v585
    %v587 = vpop.f32.mrf.mxu0
    %v588 = vpop.f32.mrf.mxu0
    %v589 = vpop.f32.mrf.mxu0
    %590 = vdwg.mxu0
    %591 = vst.msk [vmem:[#allocation11] sm:$0xff] %vm173, %v578
    %592 = vst.msk [vmem:[#allocation11 + $0x8] sm:$0xff] %vm173, %v581
    %vm593 = vcmask 814080
    %594 = vst.msk [vmem:[#allocation11 + $0x10] sm:$0xf] %vm593, %v586
    // Predicated region
    $region50: #{tpu_custom_call.1} parent=1 // pred_check
      _
    $region51: #{tpu_custom_call.1} parent=1 // pred_check_branch
      %596 = sbr.rel (0) target = $region53
    $region52: #{tpu_custom_call.1} parent=1 // pred_region
      %s598 = ssub.s32 384, 384
      %599 = vsyncadd [#allocation4], %s598
      %s600 = sshll.u32 [#allocation11], 4
      %s601 = int_to_ptr.vmem [resolvable:$true] %s600
      %606 = dma.vmem_to_hbm [thread:$0]  %s601, 384, %s7, [#allocation4], 128, 128, 8
    $region53: #{tpu_custom_call.1} parent=1 // pred_fallthru
      _
    // Predicated region
    $region54: #{tpu_custom_call.1} parent=1 // pred_check
      _
    $region55: #{tpu_custom_call.1} parent=1 // pred_check_branch
      %608 = sbr.rel (0) target = $region57
    $region56: #{tpu_custom_call.1} parent=1 // pred_region
      %609 = dma.done [#allocation4], 384
    $region57: #{tpu_custom_call.1} parent=1 // pred_fallthru
      _
    %610 = vsyncpa [#allocation3], 1
    %611 = vsyncpa [#allocation6], 1
    %612 = vsyncpa [#allocation9], 1
    %613 = vsyncpa [#allocation4], 1

</llo_original>
